<compile_context>
chip_gen: v7x
topology: tpu7x:2x2x1
jax: 0.10.0
libtpu: 0.0.40
codegen_flags: <defaults>
</compile_context>

<pallas_src>
import jax
import jax.numpy as jnp
from jax import lax
from jax.experimental import pallas as pl
from jax.experimental.pallas import tpu as pltpu


def _round_up(x, m):
    return (x + m - 1) // m * m


def _largest_aligned_divisor(total, unit, cap):
    """Largest multiple of `unit` that divides `total` and is <= cap."""
    assert total % unit == 0
    n_units = total // unit
    best = 1
    for cand in range(1, max(1, cap // unit) + 1):
        if n_units % cand == 0:
            best = cand
    return best * unit


def _vmem_capacity_bytes():
    """Per-chip VMEM capacity; conservative 64 MiB (v7x) fallback."""
    try:
        info = pltpu.get_tpu_info()
        cap = getattr(info, "vmem_capacity_bytes", None)
        if cap:
            return int(cap)
    except Exception:
        pass
    return 64 * 1024 * 1024


def _pad2(a, rows, cols):
    return jnp.pad(a, ((0, rows - a.shape[0]), (0, cols - a.shape[1])))


def prepare_aligner_params(params, *, mxu_dtype=jnp.bfloat16):
    """Pad + cast encoder parameters ONCE (init time, off the hot path).

    params: dict with w_img (K, D), b_img (D,), w_cur (F, D), b_cur (D,).
    Returns a dict of padded arrays:
      w_img (k_pad, d_pad) [mxu_dtype], w_cur (f_pad, d_pad) [mxu_dtype],
      b_img / b_cur (1, d_pad) [f32].
    Padded columns/rows are zero, so the L2 norm over padded lanes is exact.
    """
    w_img, b_img = params["w_img"], params["b_img"]
    w_cur, b_cur = params["w_cur"], params["b_cur"]
    k_img, d = w_img.shape
    f_cur = w_cur.shape[0]
    assert w_cur.shape[1] == d and b_img.shape == (d,) and b_cur.shape == (d,)

    k_pad = _round_up(k_img, 128)
    d_pad = _round_up(d, 128)
    f_pad = _round_up(f_cur, 128)

    return {
        "w_img": _pad2(w_img, k_pad, d_pad).astype(mxu_dtype),
        "b_img": jnp.pad(b_img, (0, d_pad - d)).astype(jnp.float32).reshape(1, d_pad),
        "w_cur": _pad2(w_cur, f_pad, d_pad).astype(mxu_dtype),
        "b_cur": jnp.pad(b_cur, (0, d_pad - d)).astype(jnp.float32).reshape(1, d_pad),
    }


def _aligner_kernel(x_ref, w_img_ref, b_img_ref,
                    cur_ref, w_cur_ref, b_cur_ref,
                    img_out_ref, cur_out_ref, acc_ref):
    k = pl.program_id(1)

    @pl.when(k == 0)
    def _init():
        # Bias-initialized accumulator: drops the (tn, d_pad) add and the
        # `emb` temporary from the finalize epilogue.
        acc_ref[...] = jnp.broadcast_to(
            b_img_ref[...].astype(jnp.float32), acc_ref.shape)

    # Image-encoder partial matmul on the MXU (native-dtype feed, f32 acc).
    acc_ref[...] += jnp.dot(x_ref[...], w_img_ref[...],
                            preferred_element_type=jnp.float32)

    @pl.when(k == pl.num_programs(1) - 1)
    def _finalize():
        # F.normalize(emb, p=2, dim=1, eps=1e-8):
        #   1 / clamp_min(||emb||, eps) == rsqrt(max(sum(emb^2), eps^2))
        emb = acc_ref[...]
        sq = jnp.sum(emb * emb, axis=1, keepdims=True)
        inv = lax.rsqrt(jnp.maximum(sq, 1e-16))            # EUP path
        img_out_ref[...] = (emb * inv).astype(img_out_ref.dtype)

        # Fused tiny current-encoder (one small MXU matmul in the epilogue).
        cemb = jnp.dot(cur_ref[...], w_cur_ref[...],
                       preferred_element_type=jnp.float32)
        cemb = cemb + b_cur_ref[...].astype(jnp.float32)
        csq = jnp.sum(cemb * cemb, axis=1, keepdims=True)
        cinv = lax.rsqrt(jnp.maximum(csq, 1e-16))
        cur_out_ref[...] = (cemb * cinv).astype(cur_out_ref.dtype)


def aligner_forward(image, current, prepared, *, d, out_dtype=jnp.float32):
    """Pallas Aligner.forward with linear encoders.

    image   : (N, C, H, W) NCHW
    current : (N, F)
    prepared: output of prepare_aligner_params (pre-padded, pre-cast params)
    d       : true embedding dim (static), used to slice off lane padding
    Returns (image_embedding, current_embedding), each (N, d), L2-normalized
    along dim=1 (matches torch.nn.functional.normalize with eps=1e-8).
    """
    n = image.shape[0]
    x = image.reshape(n, -1)                    # glue: flatten NCHW
    k_img = x.shape[1]
    f_cur = current.shape[1]

    w_img_p, b_img_p = prepared["w_img"], prepared["b_img"]
    w_cur_p, b_cur_p = prepared["w_cur"], prepared["b_cur"]
    k_pad, d_pad = w_img_p.shape
    f_pad = w_cur_p.shape[0]
    mxu_dtype = w_img_p.dtype
    assert k_img <= k_pad < k_img + 128
    assert f_cur <= f_pad < f_cur + 128
    assert d <= d_pad < d + 128 and w_cur_p.shape[1] == d_pad

    # ---- tile sizes (lane/sublane aligned, divisor of the padded extent) ---
    mxu_bytes = jnp.dtype(mxu_dtype).itemsize
    out_bytes = jnp.dtype(out_dtype).itemsize

    n8 = _round_up(n, 8)
    tn = min(n8, 512)
    # Megacore (v7x has 2 TCs): keep >= 2 parallel N tiles when batch allows.
    if n8 // tn < 2 and n8 >= 16:
        tn = _round_up((n8 + 1) // 2, 8)
    n_pad = _round_up(n8, tn)

    tk_cap = 1024 if mxu_bytes <= 2 else 512
    tk = _largest_aligned_divisor(k_pad, 128, tk_cap)

    # ---- per-buffer VMEM budget (2x per double-buffered block, 1x scratch) -
    def _budget(tn_, tk_):
        return (2 * tn_ * tk_ * mxu_bytes            # x block
                + 2 * tk_ * d_pad * mxu_bytes        # w_img block
                + 2 * tn_ * f_pad * mxu_bytes        # current block
                + 2 * f_pad * d_pad * mxu_bytes      # w_cur block
                + 2 * 2 * d_pad * 4                  # two f32 bias rows
                + 2 * 2 * tn_ * d_pad * out_bytes    # two double-buffered outs
                + tn_ * d_pad * 4)                   # f32 accumulator scratch

    slack = 2 * 1024 * 1024
    vmem_cap = int(0.85 * _vmem_capacity_bytes())    # ~109 MiB / ~54 MiB
    for _ in range(16):                              # shrink tiles if needed
        if _budget(tn, tk) + slack <= vmem_cap:
            break
        if tn > 8:
            tn = max(8, _round_up(tn // 2, 8))
            n_pad = _round_up(n8, tn)
        elif tk > 128:
            tk = _largest_aligned_divisor(k_pad, 128, max(128, tk // 2))
        else:
            break
    vmem_limit = int(min(max(_budget(tn, tk) + slack, 16 * 1024 * 1024),
                         vmem_cap))

    # ---- activation padding (skipped when already aligned) + MXU-dtype cast -
    if x.shape != (n_pad, k_pad):
        x = _pad2(x, n_pad, k_pad)
    x = x.astype(mxu_dtype)
    cur = current
    if cur.shape != (n_pad, f_pad):
        cur = _pad2(cur, n_pad, f_pad)
    cur = cur.astype(mxu_dtype)

    grid = (n_pad // tn, k_pad // tk)                # reduction axis last

    img_out, cur_out = pl.pallas_call(
        _aligner_kernel,
        out_shape=(jax.ShapeDtypeStruct((n_pad, d_pad), out_dtype),
                   jax.ShapeDtypeStruct((n_pad, d_pad), out_dtype)),
        grid_spec=pltpu.PrefetchScalarGridSpec(
            num_scalar_prefetch=0,
            grid=grid,
            in_specs=[
                pl.BlockSpec((tn, tk), lambda i, k: (i, k)),        # x
                pl.BlockSpec((tk, d_pad), lambda i, k: (k, 0)),     # w_img
                pl.BlockSpec((1, d_pad), lambda i, k: (0, 0)),      # b_img
                pl.BlockSpec((tn, f_pad), lambda i, k: (i, 0)),     # current
                pl.BlockSpec((f_pad, d_pad), lambda i, k: (0, 0)),  # w_cur
                pl.BlockSpec((1, d_pad), lambda i, k: (0, 0)),      # b_cur
            ],
            out_specs=[
                pl.BlockSpec((tn, d_pad), lambda i, k: (i, 0)),
                pl.BlockSpec((tn, d_pad), lambda i, k: (i, 0)),
            ],
            scratch_shapes=[pltpu.VMEM((tn, d_pad), jnp.float32)],
        ),
        compiler_params=pltpu.CompilerParams(
            dimension_semantics=("parallel", "arbitrary"),
            vmem_limit_bytes=vmem_limit,
        ),
    )(x, w_img_p, b_img_p, cur, w_cur_p, b_cur_p)

    # Strip lane/sublane padding.
    return img_out[:n, :d], cur_out[:n, :d]


def _ref_forward(image, current, params):
    """Pure-JAX reference (matches torch F.normalize semantics)."""
    n = image.shape[0]
    ie = image.reshape(n, -1) @ params["w_img"] + params["b_img"]
    ce = current @ params["w_cur"] + params["b_cur"]

    def normalize(v):
        denom = jnp.maximum(jnp.linalg.norm(v, axis=1, keepdims=True), 1e-8)
        return v / denom

    return normalize(ie), normalize(ce)


if __name__ == "__main__":
    key = jax.random.PRNGKey(0)
    k_img, k_cur, k_wimg, k_wcur, k_bimg, k_bcur = jax.random.split(key, 6)

    # Small shapes consistent with the forward pass.
    N, C, H, W = 2, 4, 16, 16     # image batch (NCHW)
    F_CUR = 8                     # "current" feature dim
    D = 32                        # embedding dim
    K_IMG = C * H * W

    image = jax.random.normal(k_img, (N, C, H, W), dtype=jnp.float32)
    current = jax.random.normal(k_cur, (N, F_CUR), dtype=jnp.float32)

    # Deterministic synthetic linear-encoder parameters.
    params = {
        "w_img": jax.random.normal(k_wimg, (K_IMG, D), dtype=jnp.float32) * 0.02,
        "b_img": jax.random.normal(k_bimg, (D,), dtype=jnp.float32) * 0.01,
        "w_cur": jax.random.normal(k_wcur, (F_CUR, D), dtype=jnp.float32) * 0.1,
        "b_cur": jax.random.normal(k_bcur, (D,), dtype=jnp.float32) * 0.01,
    }

    fwd = jax.jit(aligner_forward, static_argnames=("d", "out_dtype"))
    img_ref, cur_ref = _ref_forward(image, current, params)

    # --- f32 MXU-feed path: exact check against the pure-JAX reference ---
    prepared_f32 = prepare_aligner_params(params, mxu_dtype=jnp.float32)
    img_emb, cur_emb = fwd(image, current, prepared_f32, d=D)
    jax.block_until_ready((img_emb, cur_emb))
    assert img_emb.shape == (N, D) and cur_emb.shape == (N, D)
    assert jnp.allclose(img_emb, img_ref, atol=1e-5, rtol=1e-5)
    assert jnp.allclose(cur_emb, cur_ref, atol=1e-5, rtol=1e-5)
    assert jnp.allclose(jnp.linalg.norm(img_emb, axis=1), 1.0, atol=1e-5)
    assert jnp.allclose(jnp.linalg.norm(cur_emb, axis=1), 1.0, atol=1e-5)

    # --- default (bf16 MXU feed, f32 accumulation) perf path ---
    prepared = prepare_aligner_params(params)        # bf16 feed by default
    img_bf, cur_bf = fwd(image, current, prepared, d=D)
    jax.block_until_ready((img_bf, cur_bf))
    assert jnp.allclose(img_bf, img_ref, atol=3e-2)
    assert jnp.allclose(cur_bf, cur_ref, atol=3e-2)
    assert jnp.allclose(jnp.linalg.norm(img_bf, axis=1), 1.0, atol=1e-4)
    assert jnp.allclose(jnp.linalg.norm(cur_bf, axis=1), 1.0, atol=1e-4)

    print("KERNEL_OK")
</pallas_src>

<mosaic_0001>
module attributes {stable_mosaic.version = 11 : i64} {
  func.func @_aligner_kernel(%arg0: i32, %arg1: i32, %arg2: memref<8x512xf32, #tpu.memory_space<vmem>>, %arg3: memref<512x128xf32, #tpu.memory_space<vmem>>, %arg4: memref<1x128xf32, #tpu.memory_space<vmem>>, %arg5: memref<8x128xf32, #tpu.memory_space<vmem>>, %arg6: memref<128x128xf32, #tpu.memory_space<vmem>>, %arg7: memref<1x128xf32, #tpu.memory_space<vmem>>, %arg8: memref<8x128xf32, #tpu.memory_space<vmem>>, %arg9: memref<8x128xf32, #tpu.memory_space<vmem>>, %arg10: memref<8x128xf32, #tpu.memory_space<vmem>>) attributes {dimension_semantics = [#tpu.dimension_semantics<parallel>, #tpu.dimension_semantics<arbitrary>], iteration_bounds = array<i64: 1, 2>, scalar_prefetch = 0 : i64, scratch_operands = 1 : i64, tpu.core_type = #tpu.core_type<tc>, window_params = [{transform_indices = @transform_0, window_bounds = array<i64: 8, 512>}, {transform_indices = @transform_1, window_bounds = array<i64: 512, 128>}, {pipeline_mode = #tpu.pipeline_mode<synchronous>, transform_indices = @transform_2, window_bounds = array<i64: 1, 128>}, {transform_indices = @transform_3, window_bounds = array<i64: 8, 128>}, {pipeline_mode = #tpu.pipeline_mode<synchronous>, transform_indices = @transform_4, window_bounds = array<i64: 128, 128>}, {pipeline_mode = #tpu.pipeline_mode<synchronous>, transform_indices = @transform_5, window_bounds = array<i64: 1, 128>}, {transform_indices = @transform_6, window_bounds = array<i64: 8, 128>}, {transform_indices = @transform_7, window_bounds = array<i64: 8, 128>}]} {
    %c0_i32 = arith.constant 0 : i32
    %0 = arith.cmpi eq, %arg1, %c0_i32 : i32
    %1 = arith.extui %0 : i1 to i32
    %c0_i32_0 = arith.constant 0 : i32
    %2 = arith.cmpi ne, %1, %c0_i32_0 : i32
    scf.if %2 {
      %c0_9 = arith.constant 0 : index
      %c0_10 = arith.constant 0 : index
      %12 = vector.load %arg4[%c0_9, %c0_10] : memref<1x128xf32, #tpu.memory_space<vmem>>, vector<1x128xf32>
      %13 = vector.shape_cast %12 : vector<1x128xf32> to vector<1x128xf32>
      %14 = vector.broadcast %13 : vector<1x128xf32> to vector<8x128xf32>
      %c0_11 = arith.constant 0 : index
      %c0_12 = arith.constant 0 : index
      %15 = vector.load %arg10[%c0_11, %c0_12] : memref<8x128xf32, #tpu.memory_space<vmem>>, vector<8x128xf32>
      tpu.vector_store %arg10[%c0_11, %c0_12], %14 {strides = array<i32>} : memref<8x128xf32, #tpu.memory_space<vmem>>, vector<8x128xf32>,
    } else {
    }
    %c0 = arith.constant 0 : index
    %c0_1 = arith.constant 0 : index
    %3 = vector.load %arg10[%c0, %c0_1] : memref<8x128xf32, #tpu.memory_space<vmem>>, vector<8x128xf32>
    %c0_2 = arith.constant 0 : index
    %c0_3 = arith.constant 0 : index
    %4 = vector.load %arg2[%c0_2, %c0_3] : memref<8x512xf32, #tpu.memory_space<vmem>>, vector<8x512xf32>
    %c0_4 = arith.constant 0 : index
    %c0_5 = arith.constant 0 : index
    %5 = vector.load %arg3[%c0_4, %c0_5] : memref<512x128xf32, #tpu.memory_space<vmem>>, vector<512x128xf32>
    %cst = arith.constant dense<0.000000e+00> : vector<8x128xf32>
    %6 = tpu.matmul %4, %5, %cst {dimension_numbers = #tpu.dot_dimension_numbers<[1], [0], [0], [1], [0, 0, 1, 1], [], []>} : vector<8x512xf32>, vector<512x128xf32>, vector<8x128xf32> -> vector<8x128xf32>
    %7 = arith.addf %3, %6 : vector<8x128xf32>
    %c0_6 = arith.constant 0 : index
    %c0_7 = arith.constant 0 : index
    %8 = vector.load %arg10[%c0_6, %c0_7] : memref<8x128xf32, #tpu.memory_space<vmem>>, vector<8x128xf32>
    tpu.vector_store %arg10[%c0_6, %c0_7], %7 {strides = array<i32>} : memref<8x128xf32, #tpu.memory_space<vmem>>, vector<8x128xf32>,
    %c1_i32 = arith.constant 1 : i32
    %9 = arith.cmpi eq, %arg1, %c1_i32 : i32
    %10 = arith.extui %9 : i1 to i32
    %c0_i32_8 = arith.constant 0 : i32
    %11 = arith.cmpi ne, %10, %c0_i32_8 : i32
    scf.if %11 {
      %c0_9 = arith.constant 0 : index
      %c0_10 = arith.constant 0 : index
      %12 = vector.load %arg10[%c0_9, %c0_10] : memref<8x128xf32, #tpu.memory_space<vmem>>, vector<8x128xf32>
      %13 = arith.mulf %12, %12 : vector<8x128xf32>
      %cst_11 = arith.constant dense<0.000000e+00> : vector<8xf32>
      %14 = vector.multi_reduction <add>, %13, %cst_11 [1] : vector<8x128xf32> to vector<8xf32>
      %15 = vector.shape_cast %14 : vector<8xf32> to vector<8x1xf32>
      %cst_12 = arith.constant 1.000000e-16 : f32
      %16 = vector.broadcast %cst_12 : f32 to vector<8x1xf32>
      %17 = arith.maximumf %15, %16 : vector<8x1xf32>
      %18 = math.rsqrt %17 : vector<8x1xf32>
      %19 = vector.broadcast %18 : vector<8x1xf32> to vector<8x128xf32>
      %20 = arith.mulf %12, %19 : vector<8x128xf32>
      %c0_13 = arith.constant 0 : index
      %c0_14 = arith.constant 0 : index
      %21 = vector.load %arg8[%c0_13, %c0_14] : memref<8x128xf32, #tpu.memory_space<vmem>>, vector<8x128xf32>
      tpu.vector_store %arg8[%c0_13, %c0_14], %20 {strides = array<i32>} : memref<8x128xf32, #tpu.memory_space<vmem>>, vector<8x128xf32>,
      %c0_15 = arith.constant 0 : index
      %c0_16 = arith.constant 0 : index
      %22 = vector.load %arg5[%c0_15, %c0_16] : memref<8x128xf32, #tpu.memory_space<vmem>>, vector<8x128xf32>
      %c0_17 = arith.constant 0 : index
      %c0_18 = arith.constant 0 : index
      %23 = vector.load %arg6[%c0_17, %c0_18] : memref<128x128xf32, #tpu.memory_space<vmem>>, vector<128x128xf32>
      %cst_19 = arith.constant dense<0.000000e+00> : vector<8x128xf32>
      %24 = tpu.matmul %22, %23, %cst_19 {dimension_numbers = #tpu.dot_dimension_numbers<[1], [0], [0], [1], [0, 0, 1, 1], [], []>} : vector<8x128xf32>, vector<128x128xf32>, vector<8x128xf32> -> vector<8x128xf32>
      %c0_20 = arith.constant 0 : index
      %c0_21 = arith.constant 0 : index
      %25 = vector.load %arg7[%c0_20, %c0_21] : memref<1x128xf32, #tpu.memory_space<vmem>>, vector<1x128xf32>
      %26 = vector.broadcast %25 : vector<1x128xf32> to vector<8x128xf32>
      %27 = arith.addf %24, %26 : vector<8x128xf32>
      %28 = arith.mulf %27, %27 : vector<8x128xf32>
      %cst_22 = arith.constant dense<0.000000e+00> : vector<8xf32>
      %29 = vector.multi_reduction <add>, %28, %cst_22 [1] : vector<8x128xf32> to vector<8xf32>
      %30 = vector.shape_cast %29 : vector<8xf32> to vector<8x1xf32>
      %cst_23 = arith.constant 1.000000e-16 : f32
      %31 = vector.broadcast %cst_23 : f32 to vector<8x1xf32>
      %32 = arith.maximumf %30, %31 : vector<8x1xf32>
      %33 = math.rsqrt %32 : vector<8x1xf32>
      %34 = vector.broadcast %33 : vector<8x1xf32> to vector<8x128xf32>
      %35 = arith.mulf %27, %34 : vector<8x128xf32>
      %c0_24 = arith.constant 0 : index
      %c0_25 = arith.constant 0 : index
      %36 = vector.load %arg9[%c0_24, %c0_25] : memref<8x128xf32, #tpu.memory_space<vmem>>, vector<8x128xf32>
      tpu.vector_store %arg9[%c0_24, %c0_25], %35 {strides = array<i32>} : memref<8x128xf32, #tpu.memory_space<vmem>>, vector<8x128xf32>,
    } else {
    }
    return
  }
  func.func @transform_0(%arg0: i32, %arg1: i32) -> (i32, i32) {
    %c0_i32 = arith.constant 0 : i32
    return %arg0, %arg1 : i32, i32
  }
  func.func @transform_1(%arg0: i32, %arg1: i32) -> (i32, i32) {
    %c0_i32 = arith.constant 0 : i32
    %c0_i32_0 = arith.constant 0 : i32
    return %arg1, %c0_i32 : i32, i32
  }
  func.func @transform_2(%arg0: i32, %arg1: i32) -> (i32, i32) {
    %c0_i32 = arith.constant 0 : i32
    %c0_i32_0 = arith.constant 0 : i32
    %c0_i32_1 = arith.constant 0 : i32
    return %c0_i32, %c0_i32_0 : i32, i32
  }
  func.func @transform_3(%arg0: i32, %arg1: i32) -> (i32, i32) {
    %c0_i32 = arith.constant 0 : i32
    %c0_i32_0 = arith.constant 0 : i32
    return %arg0, %c0_i32 : i32, i32
  }
  func.func @transform_4(%arg0: i32, %arg1: i32) -> (i32, i32) {
    %c0_i32 = arith.constant 0 : i32
    %c0_i32_0 = arith.constant 0 : i32
    %c0_i32_1 = arith.constant 0 : i32
    return %c0_i32, %c0_i32_0 : i32, i32
  }
  func.func @transform_5(%arg0: i32, %arg1: i32) -> (i32, i32) {
    %c0_i32 = arith.constant 0 : i32
    %c0_i32_0 = arith.constant 0 : i32
    %c0_i32_1 = arith.constant 0 : i32
    return %c0_i32, %c0_i32_0 : i32, i32
  }
  func.func @transform_6(%arg0: i32, %arg1: i32) -> (i32, i32) {
    %c0_i32 = arith.constant 0 : i32
    %c0_i32_0 = arith.constant 0 : i32
    return %arg0, %c0_i32 : i32, i32
  }
  func.func @transform_7(%arg0: i32, %arg1: i32) -> (i32, i32) {
    %c0_i32 = arith.constant 0 : i32
    %c0_i32_0 = arith.constant 0 : i32
    return %arg0, %c0_i32 : i32, i32
  }
}

</mosaic_0001>

<llo_original>
// kernel: aligner_forward.1
$region0: #{aligner_forward.1}
  #allocation0 [shape = 'u32[]', space=smem, size = 0x4, offset = 0x4, fixed_abs, tag = 'smem constant byte address 0x4 - core index']
  #allocation1 [shape = 'u32[144,128]{1,0:T(1,128)}', space=vmem, size = 0x12000, scoped, tag = 'internal scratch']
  #allocation2 [shape = 'f32[8,128]{1,0:T(8,128)}', space=vmem, size = 0x1000, scoped, tag = 'scratch operand']
  %s0 = inlined_call_operand.vmem [shape: f32[8,1024], index: 0, kind: input, shape index: {}]
  %s1 = inlined_call_operand.hbm [shape: f32[1024,128], index: 1, kind: input, shape index: {}]
  %s2 = inlined_call_operand.vmem [shape: f32[1,128], index: 2, kind: input, shape index: {}]
  %s3 = inlined_call_operand.vmem [shape: f32[8,128], index: 3, kind: input, shape index: {}]
  %s4 = inlined_call_operand.vmem [shape: f32[128,128], index: 4, kind: input, shape index: {}]
  %s5 = inlined_call_operand.vmem [shape: f32[1,128], index: 5, kind: input, shape index: {}]
  %s6 = inlined_call_operand.vmem [shape: f32[8,128], index: 6, kind: output, shape index: {0}]
  %s7 = inlined_call_operand.vmem [shape: f32[8,128], index: 7, kind: output, shape index: {1}]
  %8 = xla_tuple %s6, %s7
  %s9 = sld [smem:[#allocation0]]
  $region77: #{aligner_forward.1} parent=0
    _
  %s11 = ssub.s32 1, %s9
  %s12 = scalar_select 0, %s11, %s9
  $region1: #{aligner_forward.1} parent=0
    #allocation3 [shape = 'u8[524288]{0}', space=vmem, size = 0x80000, scoped, tag = 'input window, operand 1']
    #allocation4 [shape = 's32[2]{0}', space=sflag, size = 0x8, scoped, tag = 'scoped memory for aligner_forward.1']
    %13 = vsyncpa [#allocation4], 0
    %s14 = scalar_lea.sflag [#allocation4], 1
    %15 = vsyncpa %s14, 0
    loop: start=0, step=1, limit=4
    $region2: #{aligner_forward.1} parent=1 // loop_pre_header
      _
    $region3: #{aligner_forward.1} parent=1 // loop_header
      %s17 = sphi 0, %s21
      %p18 = scmp.ge.s32.totalorder %s17, 4
      %s24 = sphi 0, %s36
      %s25 = sphi 0, %s32
      %s26 = sphi 0, %s24
      %s27 = sphi 0, %s25
      %s28 = sphi 0, %s26
      %s29 = sphi 0, %s27
      %s41 = sphi 0, %s43
      %s44 = sphi 0, %s41
      %s45 = sphi 0, %s44
      %s61 = sphi 0, %s45
      %s67 = sphi 0, %s69
      %s70 = sphi 0, %s67
      %s71 = sphi 0, %s70
      %s87 = sphi 0, %s71
      %s91 = sphi 0, %s91
      %s93 = sphi 0, %s91
      %s94 = sphi 0, %s93
      %s108 = sphi 0, %s94
      %s114 = sphi 0, %s116
      %s117 = sphi 0, %s114
      %s118 = sphi 0, %s117
      %s134 = sphi 0, %s118
      %s138 = sphi 0, %s138
      %s140 = sphi 0, %s138
      %s141 = sphi 0, %s140
      %s155 = sphi 0, %s141
      %s159 = sphi 0, %s159
      %s161 = sphi 0, %s159
      %s162 = sphi 0, %s161
      %s176 = sphi 0, %s162
      %s182 = sphi 0, %s184
      %s185 = sphi 0, %s182
      %s186 = sphi 0, %s185
      %s202 = sphi 0, %s186
      %s208 = sphi 0, %s210
      %s211 = sphi 0, %s208
      %s212 = sphi 0, %s211
      %s228 = sphi 0, %s212
    $region4: #{aligner_forward.1} parent=1 // loop_header_branch
      %20 = sbr.rel (%p18) target = $region8
    $region5: #{aligner_forward.1} parent=1 // loop_body
      %s22 = ssub.s32 %s17, 1
      %s23 = ssub.s32 %s17, 2
      %s30 = sadd.s32 1, %s25
      %p31 = scmp.ge.s32.totalorder %s30, 2
      %s32 = scalar_select %p31, 0, %s30
      %s33 = sadd.s32 1, %s24
      %s34 = scalar_select %p31, %s33, %s24
      %p35 = scmp.ge.s32.totalorder %s34, 1
      %s36 = scalar_select %p35, 0, %s34
      %s37 = ssub.s32 %s24, %s36
      %s38 = ssub.s32 %s25, %s32
      %s39 = sor.u32 %s37, %s38
      %p40 = scmp.eq.s32.totalorder %s39, 0
      %s42 = sadd.s32 %s41, 1
      %s43 = scalar_select %p40, %s41, %s42
      %p46 = pneg %p40
      %p47 = scmp.eq.s32.totalorder %s17, 1
      %p48 = por %p46, %p47
      %p49 = scmp.ne.s32.totalorder %s41, %s44
      %p50 = scmp.eq.s32.totalorder %s17, 0
      %p51 = por %p49, %p50
      %p52 = scmp.ne.s32.totalorder %s41, %s44
      %p53 = scmp.eq.s32.totalorder %s22, 1
      %p54 = por %p52, %p53
      %p55 = scmp.ne.s32.totalorder %s44, %s45
      %p56 = scmp.eq.s32.totalorder %s22, 0
      %p57 = por %p55, %p56
      %p58 = scmp.ne.s32.totalorder %s44, %s45
      %p59 = scmp.eq.s32.totalorder %s23, 1
      %p60 = por %p58, %p59
      %p62 = scmp.ne.s32.totalorder %s45, %s61
      %p63 = scmp.eq.s32.totalorder %s23, 0
      %p64 = por %p62, %p63
      %s65 = ssub.s32 %s25, %s32
      %p66 = scmp.eq.s32.totalorder %s65, 0
      %s68 = sadd.s32 %s67, 1
      %s69 = scalar_select %p66, %s67, %s68
      %p72 = pneg %p66
      %p73 = scmp.eq.s32.totalorder %s17, 1
      %p74 = por %p72, %p73
      %p75 = scmp.ne.s32.totalorder %s67, %s70
      %p76 = scmp.eq.s32.totalorder %s17, 0
      %p77 = por %p75, %p76
      %p78 = scmp.ne.s32.totalorder %s67, %s70
      %p79 = scmp.eq.s32.totalorder %s22, 1
      %p80 = por %p78, %p79
      %p81 = scmp.ne.s32.totalorder %s70, %s71
      %p82 = scmp.eq.s32.totalorder %s22, 0
      %p83 = por %p81, %p82
      %p84 = scmp.ne.s32.totalorder %s70, %s71
      %p85 = scmp.eq.s32.totalorder %s23, 1
      %p86 = por %p84, %p85
      %p88 = scmp.ne.s32.totalorder %s71, %s87
      %p89 = scmp.eq.s32.totalorder %s23, 0
      %p90 = por %p88, %p89
      %s92 = sadd.s32 %s91, 1
      %p95 = scmp.eq.s32.totalorder %s17, 1
      %p96 = scmp.ne.s32.totalorder %s91, %s93
      %p97 = scmp.eq.s32.totalorder %s17, 0
      %p98 = por %p96, %p97
      %p99 = scmp.ne.s32.totalorder %s91, %s93
      %p100 = scmp.eq.s32.totalorder %s22, 1
      %p101 = por %p99, %p100
      %p102 = scmp.ne.s32.totalorder %s93, %s94
      %p103 = scmp.eq.s32.totalorder %s22, 0
      %p104 = por %p102, %p103
      %p105 = scmp.ne.s32.totalorder %s93, %s94
      %p106 = scmp.eq.s32.totalorder %s23, 1
      %p107 = por %p105, %p106
      %p109 = scmp.ne.s32.totalorder %s94, %s108
      %p110 = scmp.eq.s32.totalorder %s23, 0
      %p111 = por %p109, %p110
      %s112 = ssub.s32 %s24, %s36
      %p113 = scmp.eq.s32.totalorder %s112, 0
      %s115 = sadd.s32 %s114, 1
      %s116 = scalar_select %p113, %s114, %s115
      %p119 = pneg %p113
      %p120 = scmp.eq.s32.totalorder %s17, 1
      %p121 = por %p119, %p120
      %p122 = scmp.ne.s32.totalorder %s114, %s117
      %p123 = scmp.eq.s32.totalorder %s17, 0
      %p124 = por %p122, %p123
      %p125 = scmp.ne.s32.totalorder %s114, %s117
      %p126 = scmp.eq.s32.totalorder %s22, 1
      %p127 = por %p125, %p126
      %p128 = scmp.ne.s32.totalorder %s117, %s118
      %p129 = scmp.eq.s32.totalorder %s22, 0
      %p130 = por %p128, %p129
      %p131 = scmp.ne.s32.totalorder %s117, %s118
      %p132 = scmp.eq.s32.totalorder %s23, 1
      %p133 = por %p131, %p132
      %p135 = scmp.ne.s32.totalorder %s118, %s134
      %p136 = scmp.eq.s32.totalorder %s23, 0
      %p137 = por %p135, %p136
      %s139 = sadd.s32 %s138, 1
      %p142 = scmp.eq.s32.totalorder %s17, 1
      %p143 = scmp.ne.s32.totalorder %s138, %s140
      %p144 = scmp.eq.s32.totalorder %s17, 0
      %p145 = por %p143, %p144
      %p146 = scmp.ne.s32.totalorder %s138, %s140
      %p147 = scmp.eq.s32.totalorder %s22, 1
      %p148 = por %p146, %p147
      %p149 = scmp.ne.s32.totalorder %s140, %s141
      %p150 = scmp.eq.s32.totalorder %s22, 0
      %p151 = por %p149, %p150
      %p152 = scmp.ne.s32.totalorder %s140, %s141
      %p153 = scmp.eq.s32.totalorder %s23, 1
      %p154 = por %p152, %p153
      %p156 = scmp.ne.s32.totalorder %s141, %s155
      %p157 = scmp.eq.s32.totalorder %s23, 0
      %p158 = por %p156, %p157
      %s160 = sadd.s32 %s159, 1
      %p163 = scmp.eq.s32.totalorder %s17, 1
      %p164 = scmp.ne.s32.totalorder %s159, %s161
      %p165 = scmp.eq.s32.totalorder %s17, 0
      %p166 = por %p164, %p165
      %p167 = scmp.ne.s32.totalorder %s159, %s161
      %p168 = scmp.eq.s32.totalorder %s22, 1
      %p169 = por %p167, %p168
      %p170 = scmp.ne.s32.totalorder %s161, %s162
      %p171 = scmp.eq.s32.totalorder %s22, 0
      %p172 = por %p170, %p171
      %p173 = scmp.ne.s32.totalorder %s161, %s162
      %p174 = scmp.eq.s32.totalorder %s23, 1
      %p175 = por %p173, %p174
      %p177 = scmp.ne.s32.totalorder %s162, %s176
      %p178 = scmp.eq.s32.totalorder %s23, 0
      %p179 = por %p177, %p178
      %s180 = ssub.s32 %s24, %s36
      %p181 = scmp.eq.s32.totalorder %s180, 0
      %s183 = sadd.s32 %s182, 1
      %s184 = scalar_select %p181, %s182, %s183
      %p187 = pneg %p181
      %p188 = scmp.eq.s32.totalorder %s17, 1
      %p189 = por %p187, %p188
      %p190 = scmp.ne.s32.totalorder %s182, %s185
      %p191 = scmp.eq.s32.totalorder %s17, 0
      %p192 = por %p190, %p191
      %p193 = scmp.ne.s32.totalorder %s182, %s185
      %p194 = scmp.eq.s32.totalorder %s22, 1
      %p195 = por %p193, %p194
      %p196 = scmp.ne.s32.totalorder %s185, %s186
      %p197 = scmp.eq.s32.totalorder %s22, 0
      %p198 = por %p196, %p197
      %p199 = scmp.ne.s32.totalorder %s185, %s186
      %p200 = scmp.eq.s32.totalorder %s23, 1
      %p201 = por %p199, %p200
      %p203 = scmp.ne.s32.totalorder %s186, %s202
      %p204 = scmp.eq.s32.totalorder %s23, 0
      %p205 = por %p203, %p204
      %s206 = ssub.s32 %s24, %s36
      %p207 = scmp.eq.s32.totalorder %s206, 0
      %s209 = sadd.s32 %s208, 1
      %s210 = scalar_select %p207, %s208, %s209
      %p213 = pneg %p207
      %p214 = scmp.eq.s32.totalorder %s17, 1
      %p215 = por %p213, %p214
      %p216 = scmp.ne.s32.totalorder %s208, %s211
      %p217 = scmp.eq.s32.totalorder %s17, 0
      %p218 = por %p216, %p217
      %p219 = scmp.ne.s32.totalorder %s208, %s211
      %p220 = scmp.eq.s32.totalorder %s22, 1
      %p221 = por %p219, %p220
      %p222 = scmp.ne.s32.totalorder %s211, %s212
      %p223 = scmp.eq.s32.totalorder %s22, 0
      %p224 = por %p222, %p223
      %p225 = scmp.ne.s32.totalorder %s211, %s212
      %p226 = scmp.eq.s32.totalorder %s23, 1
      %p227 = por %p225, %p226
      %p229 = scmp.ne.s32.totalorder %s212, %s228
      %p230 = scmp.eq.s32.totalorder %s23, 0
      %p231 = por %p229, %p230
      %p232 = scmp.le.s32.totalorder 1, %s17
      %p233 = scmp.lt.s32.totalorder %s17, 3
      %p234 = pnand %p232, %p233
      %p235 = pneg %p234
      // Predicated region
      $region9: #{aligner_forward.1} parent=5 // pred_check
        _
      $region10: #{aligner_forward.1} parent=5 // pred_check_branch
        %237 = sbr.rel (%p234) target = $region12
      $region11: #{aligner_forward.1} parent=5 // pred_region
        %s238 = ssub.s32 %s17, 1
        // Predicated region
        $region13: #{aligner_forward.1} parent=11 // pred_check
          %p239 = pneg %p104
        $region14: #{aligner_forward.1} parent=11 // pred_check_branch
          %241 = sbr.rel (%p239) target = $region16
        $region15: #{aligner_forward.1} parent=11 // pred_region
          _
        $region16: #{aligner_forward.1} parent=11 // pred_fallthru
          _
        // Predicated region
        $region17: #{aligner_forward.1} parent=11 // pred_check
          %p242 = pneg %p130
        $region18: #{aligner_forward.1} parent=11 // pred_check_branch
          %244 = sbr.rel (%p242) target = $region20
        $region19: #{aligner_forward.1} parent=11 // pred_region
          %p245 = scmp.lt.s32.totalorder %s26, 0
          %s246 = scalar_select %p245, %s26, 0
          %s247 = smul.addr %s246, 8
          %s248 = scalar_lea.vmem %s3, %s247
        $region20: #{aligner_forward.1} parent=11 // pred_fallthru
          _
        // Predicated region
        $region21: #{aligner_forward.1} parent=11 // pred_check
          %p249 = pneg %p151
        $region22: #{aligner_forward.1} parent=11 // pred_check_branch
          %251 = sbr.rel (%p249) target = $region24
        $region23: #{aligner_forward.1} parent=11 // pred_region
          _
        $region24: #{aligner_forward.1} parent=11 // pred_fallthru
          _
        // Predicated region
        $region25: #{aligner_forward.1} parent=11 // pred_check
          %p252 = pneg %p172
        $region26: #{aligner_forward.1} parent=11 // pred_check_branch
          %254 = sbr.rel (%p252) target = $region28
        $region27: #{aligner_forward.1} parent=11 // pred_region
          _
        $region28: #{aligner_forward.1} parent=11 // pred_fallthru
          _
      $region12: #{aligner_forward.1} parent=5 // pred_fallthru
        _
      %p255 = scmp.lt.s32.totalorder %s17, 2
      // Predicated region
      $region29: #{aligner_forward.1} parent=5 // pred_check
        %p256 = pneg %p255
      $region30: #{aligner_forward.1} parent=5 // pred_check_branch
        %258 = sbr.rel (%p256) target = $region32
      $region31: #{aligner_forward.1} parent=5 // pred_region
        // Predicated region
        $region33: #{aligner_forward.1} parent=31 // pred_check
          %p259 = pneg %p51
        $region34: #{aligner_forward.1} parent=31 // pred_check_branch
          %261 = sbr.rel (%p259) target = $region36
        $region35: #{aligner_forward.1} parent=31 // pred_region
          %s262 = smul.u32 4, %s25
          %p263 = scmp.lt.s32.totalorder %s24, 0
          %s264 = scalar_select %p263, %s24, 0
          %p265 = scmp.lt.s32.totalorder %s262, 7
          %s266 = scalar_select %p265, %s262, 7
          %s267 = smul.addr %s264, 8
          %s268 = sadd.s32 %s266, %s267
          %s269 = smul.addr %s268, 8
          %s270 = scalar_lea.vmem %s0, %s269
          %s271 = smul.u32 4, %s25
        $region36: #{aligner_forward.1} parent=31 // pred_fallthru
          _
        // Predicated region
        $region37: #{aligner_forward.1} parent=31 // pred_check
          %p272 = pneg %p77
        $region38: #{aligner_forward.1} parent=31 // pred_check_branch
          %274 = sbr.rel (%p272) target = $region40
        $region39: #{aligner_forward.1} parent=31 // pred_region
          %s275 = sand.u32 %s67, 1
          %s276 = scalar_lea.sflag [#allocation4], %s275
          %s277 = sand.u32 %s67, 1
          %s278 = smul.addr %s277, 512
          %s279 = scalar_lea.vmem [#allocation3], %s278
          %s280 = smul.u32 64, %s25
          %s282 = ssub.s32 8192, 8192
          %283 = vsyncadd %s276, %s282
          %s284 = smul.addr %s280, 128
          %s285 = scalar_lea.hbm %s1, %s284
          %s286 = sshll.u32 %s279, 4
          %s287 = int_to_ptr.vmem [resolvable:$true] %s286
          %292 = dma.hbm_to_vmem [thread:$0]  %s285, 8192, %s287, %s276, 128, 128, 8
        $region40: #{aligner_forward.1} parent=31 // pred_fallthru
          _
      $region32: #{aligner_forward.1} parent=5 // pred_fallthru
        _
      %p293 = scmp.le.s32.totalorder 1, %s17
      %p294 = scmp.lt.s32.totalorder %s17, 3
      %p295 = pnand %p293, %p294
      %p296 = pneg %p295
      // Predicated region
      $region41: #{aligner_forward.1} parent=5 // pred_check
        _
      $region42: #{aligner_forward.1} parent=5 // pred_check_branch
        %298 = sbr.rel (%p295) target = $region44
      $region43: #{aligner_forward.1} parent=5 // pred_region
        %s299 = ssub.s32 %s17, 1
        %s300 = sand.u32 %s70, 1
        %s301 = scalar_lea.sflag [#allocation4], %s300
        %s302 = sand.u32 %s70, 1
        %s303 = smul.addr %s302, 512
        %s304 = scalar_lea.vmem [#allocation3], %s303
        // Predicated region
        $region45: #{aligner_forward.1} parent=43 // pred_check
          %p305 = pneg %p83
        $region46: #{aligner_forward.1} parent=43 // pred_check_branch
          %307 = sbr.rel (%p305) target = $region48
        $region47: #{aligner_forward.1} parent=43 // pred_region
          %308 = dma.done %s301, 8192
        $region48: #{aligner_forward.1} parent=43 // pred_fallthru
          _
        %s309 = smul.u32 4, %s27
        %p310 = scmp.lt.s32.totalorder %s26, 0
        %s311 = scalar_select %p310, %s26, 0
        %p312 = scmp.lt.s32.totalorder %s309, 7
        %s313 = scalar_select %p312, %s309, 7
        %s314 = smul.addr %s311, 8
        %s315 = sadd.s32 %s313, %s314
        %s316 = smul.addr %s315, 8
        %s317 = scalar_lea.vmem %s0, %s316
        %p318 = pneg %p57
        %p319 = pneg %p54
        %s320 = sand.u32 %s70, 1
        %s321 = scalar_lea.sflag [#allocation4], %s320
        %s322 = sand.u32 %s70, 1
        %s323 = smul.addr %s322, 512
        %s324 = scalar_lea.vmem [#allocation3], %s323
        %p325 = pneg %p83
        %p326 = pneg %p80
        %p327 = pneg %p104
        %p328 = pneg %p101
        %p329 = scmp.lt.s32.totalorder %s26, 0
        %s330 = scalar_select %p329, %s26, 0
        %s331 = smul.addr %s330, 8
        %s332 = scalar_lea.vmem %s3, %s331
        %p333 = pneg %p130
        %p334 = pneg %p127
        %p335 = pneg %p151
        %p336 = pneg %p148
        %p337 = pneg %p172
        %p338 = pneg %p169
        %p339 = pneg %p198
        %p340 = pneg %p195
        %p341 = scmp.lt.s32.totalorder %s26, 0
        %s342 = scalar_select %p341, %s26, 0
        %s343 = smul.addr %s342, 8
        %s344 = scalar_lea.vmem %s6, %s343
        %p345 = pneg %p224
        %p346 = pneg %p221
        %p347 = scmp.lt.s32.totalorder %s26, 0
        %s348 = scalar_select %p347, %s26, 0
        %s349 = smul.addr %s348, 8
        %s350 = scalar_lea.vmem %s7, %s349
        %s351 = smul.u32 4, %s27
        %p352 = scmp.lt.s32.totalorder %s26, 0
        %s353 = scalar_select %p352, %s26, 0
        %p354 = scmp.lt.s32.totalorder %s351, 7
        %s355 = scalar_select %p354, %s351, 7
        %s356 = smul.addr %s353, 8
        %s357 = sadd.s32 %s355, %s356
        %s358 = smul.addr %s357, 8
        %s359 = scalar_lea.vmem %s0, %s358
        %s360 = smul.u32 4, %s27
        %s361 = smul.u32 64, %s27
        %p362 = scmp.lt.s32.totalorder %s26, 0
        %s363 = scalar_select %p362, %s26, 0
        %s364 = smul.addr %s363, 8
        %s365 = scalar_lea.vmem %s3, %s364
        %p366 = scmp.lt.s32.totalorder %s26, 0
        %s367 = scalar_select %p366, %s26, 0
        %s368 = smul.addr %s367, 8
        %s369 = scalar_lea.vmem %s6, %s368
        %p370 = scmp.lt.s32.totalorder %s26, 0
        %s371 = scalar_select %p370, %s26, 0
        %s372 = smul.addr %s371, 8
        %s373 = scalar_lea.vmem %s7, %s372
        %p374 = scmp.eq.s32.totalorder %s27, 0
        // Predicated region
        $region49: #{aligner_forward.1} parent=43 // pred_check
          %p375 = pneg %p374
        $region50: #{aligner_forward.1} parent=43 // pred_check_branch
          %377 = sbr.rel (%p375) target = $region52
        $region51: #{aligner_forward.1} parent=43 // pred_region
          %v378 = vld [vmem:[%s2] sm:$0x1]
          %v380 = vlaneseq
          %v381 = vshrl.u32 %v380, 7
          %v382 = vsub.s32 0, %v381
          %v383 = vrot.slane %v378, %v382
          %385 = vst [vmem:[#allocation2] sm:$0xff] %v383
        $region52: #{aligner_forward.1} parent=43 // pred_fallthru
          _
        %v386 = vld [vmem:[#allocation2] sm:$0xff]
        %v387 = vld [vmem:[%s359] sm:$0xff]
        %v388 = vld [vmem:[%s359 + $0x8] sm:$0xff]
        %v389 = vld [vmem:[%s359 + $0x10] sm:$0xff]
        %v390 = vld [vmem:[%s359 + $0x18] sm:$0xff]
        %v391 = vld [vmem:[%s304] sm:$0xff]
        %v392 = vld [vmem:[%s304 + $0x8] sm:$0xff]
        %v393 = vld [vmem:[%s304 + $0x10] sm:$0xff]
        %v394 = vld [vmem:[%s304 + $0x18] sm:$0xff]
        %v395 = vld [vmem:[%s304 + $0x20] sm:$0xff]
        %v396 = vld [vmem:[%s304 + $0x28] sm:$0xff]
        %v397 = vld [vmem:[%s304 + $0x30] sm:$0xff]
        %v398 = vld [vmem:[%s304 + $0x38] sm:$0xff]
        %v399 = vld [vmem:[%s304 + $0x40] sm:$0xff]
        %v400 = vld [vmem:[%s304 + $0x48] sm:$0xff]
        %v401 = vld [vmem:[%s304 + $0x50] sm:$0xff]
        %v402 = vld [vmem:[%s304 + $0x58] sm:$0xff]
        %v403 = vld [vmem:[%s304 + $0x60] sm:$0xff]
        %v404 = vld [vmem:[%s304 + $0x68] sm:$0xff]
        %v405 = vld [vmem:[%s304 + $0x70] sm:$0xff]
        %v406 = vld [vmem:[%s304 + $0x78] sm:$0xff]
        %v407 = vld [vmem:[%s304 + $0x80] sm:$0xff]
        %v408 = vld [vmem:[%s304 + $0x88] sm:$0xff]
        %v409 = vld [vmem:[%s304 + $0x90] sm:$0xff]
        %v410 = vld [vmem:[%s304 + $0x98] sm:$0xff]
        %v411 = vld [vmem:[%s304 + $0xa0] sm:$0xff]
        %v412 = vld [vmem:[%s304 + $0xa8] sm:$0xff]
        %v413 = vld [vmem:[%s304 + $0xb0] sm:$0xff]
        %v414 = vld [vmem:[%s304 + $0xb8] sm:$0xff]
        %v415 = vld [vmem:[%s304 + $0xc0] sm:$0xff]
        %v416 = vld [vmem:[%s304 + $0xc8] sm:$0xff]
        %v417 = vld [vmem:[%s304 + $0xd0] sm:$0xff]
        %v418 = vld [vmem:[%s304 + $0xd8] sm:$0xff]
        %v419 = vld [vmem:[%s304 + $0xe0] sm:$0xff]
        %v420 = vld [vmem:[%s304 + $0xe8] sm:$0xff]
        %v421 = vld [vmem:[%s304 + $0xf0] sm:$0xff]
        %v422 = vld [vmem:[%s304 + $0xf8] sm:$0xff]
        %v423 = vld [vmem:[%s304 + $0x100] sm:$0xff]
        %v424 = vld [vmem:[%s304 + $0x108] sm:$0xff]
        %v425 = vld [vmem:[%s304 + $0x110] sm:$0xff]
        %v426 = vld [vmem:[%s304 + $0x118] sm:$0xff]
        %v427 = vld [vmem:[%s304 + $0x120] sm:$0xff]
        %v428 = vld [vmem:[%s304 + $0x128] sm:$0xff]
        %v429 = vld [vmem:[%s304 + $0x130] sm:$0xff]
        %v430 = vld [vmem:[%s304 + $0x138] sm:$0xff]
        %v431 = vld [vmem:[%s304 + $0x140] sm:$0xff]
        %v432 = vld [vmem:[%s304 + $0x148] sm:$0xff]
        %v433 = vld [vmem:[%s304 + $0x150] sm:$0xff]
        %v434 = vld [vmem:[%s304 + $0x158] sm:$0xff]
        %v435 = vld [vmem:[%s304 + $0x160] sm:$0xff]
        %v436 = vld [vmem:[%s304 + $0x168] sm:$0xff]
        %v437 = vld [vmem:[%s304 + $0x170] sm:$0xff]
        %v438 = vld [vmem:[%s304 + $0x178] sm:$0xff]
        %v439 = vld [vmem:[%s304 + $0x180] sm:$0xff]
        %v440 = vld [vmem:[%s304 + $0x188] sm:$0xff]
        %v441 = vld [vmem:[%s304 + $0x190] sm:$0xff]
        %v442 = vld [vmem:[%s304 + $0x198] sm:$0xff]
        %v443 = vld [vmem:[%s304 + $0x1a0] sm:$0xff]
        %v444 = vld [vmem:[%s304 + $0x1a8] sm:$0xff]
        %v445 = vld [vmem:[%s304 + $0x1b0] sm:$0xff]
        %v446 = vld [vmem:[%s304 + $0x1b8] sm:$0xff]
        %v447 = vld [vmem:[%s304 + $0x1c0] sm:$0xff]
        %v448 = vld [vmem:[%s304 + $0x1c8] sm:$0xff]
        %v449 = vld [vmem:[%s304 + $0x1d0] sm:$0xff]
        %v450 = vld [vmem:[%s304 + $0x1d8] sm:$0xff]
        %v451 = vld [vmem:[%s304 + $0x1e0] sm:$0xff]
        %v452 = vld [vmem:[%s304 + $0x1e8] sm:$0xff]
        %v453 = vld [vmem:[%s304 + $0x1f0] sm:$0xff]
        %v454 = vld [vmem:[%s304 + $0x1f8] sm:$0xff]
        %455 = vmatprep.subr.mxu0 0.0
        %456 = vmatpush1.msra.mxu0 %v391
        %457 = vmatprep.subr.mxu0 0.0
        %458 = vmatpush1.msra.mxu0 %v392
        %459 = vmatprep.subr.mxu0 0.0
        %460 = vmatpush1.msra.mxu0 %v393
        %461 = vmatprep.subr.mxu0 0.0
        %462 = vmatpush1.msra.mxu0 %v394
        %463 = vmatprep.subr.mxu0 0.0
        %464 = vmatpush1.msra.mxu0 %v395
        %465 = vmatprep.subr.mxu0 0.0
        %466 = vmatpush1.msra.mxu0 %v396
        %467 = vmatprep.subr.mxu0 0.0
        %468 = vmatpush1.msra.mxu0 %v397
        %469 = vmatprep.subr.mxu0 0.0
        %470 = vmatpush1.msra.mxu0 %v398
        %471 = vmatprep.subr.mxu0 0.0
        %472 = vmatpush1.msra.mxu0 %v399
        %473 = vmatprep.subr.mxu0 0.0
        %474 = vmatpush1.msra.mxu0 %v400
        %475 = vmatprep.subr.mxu0 0.0
        %476 = vmatpush1.msra.mxu0 %v401
        %477 = vmatprep.subr.mxu0 0.0
        %478 = vmatpush1.msra.mxu0 %v402
        %479 = vmatprep.subr.mxu0 0.0
        %480 = vmatpush1.msra.mxu0 %v403
        %481 = vmatprep.subr.mxu0 0.0
        %482 = vmatpush1.msra.mxu0 %v404
        %483 = vmatprep.subr.mxu0 0.0
        %484 = vmatpush1.msra.mxu0 %v405
        %485 = vmatprep.subr.mxu0 0.0
        %486 = vmatpush1.msra.mxu0 %v406
        %487 = vmatprep.subr.mxu0 0.0
        %488 = vmatpush1.msra.mxu0 %v407
        %489 = vmatprep.subr.mxu0 0.0
        %490 = vmatpush1.msra.mxu0 %v408
        %491 = vmatprep.subr.mxu0 0.0
        %492 = vmatpush1.msra.mxu0 %v409
        %493 = vmatprep.subr.mxu0 0.0
        %494 = vmatpush1.msra.mxu0 %v410
        %495 = vmatprep.subr.mxu0 0.0
        %496 = vmatpush1.msra.mxu0 %v411
        %497 = vmatprep.subr.mxu0 0.0
        %498 = vmatpush1.msra.mxu0 %v412
        %499 = vmatprep.subr.mxu0 0.0
        %500 = vmatpush1.msra.mxu0 %v413
        %501 = vmatprep.subr.mxu0 0.0
        %502 = vmatpush1.msra.mxu0 %v414
        %503 = vmatprep.subr.mxu0 0.0
        %504 = vmatpush1.msra.mxu0 %v415
        %505 = vmatprep.subr.mxu0 0.0
        %506 = vmatpush1.msra.mxu0 %v416
        %507 = vmatprep.subr.mxu0 0.0
        %508 = vmatpush1.msra.mxu0 %v417
        %509 = vmatprep.subr.mxu0 0.0
        %510 = vmatpush1.msra.mxu0 %v418
        %511 = vmatprep.subr.mxu0 0.0
        %512 = vmatpush1.msra.mxu0 %v419
        %513 = vmatprep.subr.mxu0 0.0
        %514 = vmatpush1.msra.mxu0 %v420
        %515 = vmatprep.subr.mxu0 0.0
        %516 = vmatpush1.msra.mxu0 %v421
        %517 = vmatprep.subr.mxu0 0.0
        %518 = vmatpush1.msra.mxu0 %v422
        %519 = vmatprep.mubr.f32.mxu0 %v388
        %520 = vmatmul.mubr.f32.gmra.mrb[0].mxu0 %v387
        %v521 = vpop.f32.mrb[0].mxu0
        %v522 = vadd.f32 0.0, %v521
        %v523 = vpop.f32.mrb[0].mxu0
        %524 = vdwg.mxu0
        %525 = vmatprep.subr.mxu0 0.0
        %526 = vmatpush1.msra.mxu0 %v423
        %527 = vmatprep.subr.mxu0 0.0
        %528 = vmatpush1.msra.mxu0 %v424
        %529 = vmatprep.subr.mxu0 0.0
        %530 = vmatpush1.msra.mxu0 %v425
        %531 = vmatprep.subr.mxu0 0.0
        %532 = vmatpush1.msra.mxu0 %v426
        %533 = vmatprep.subr.mxu0 0.0
        %534 = vmatpush1.msra.mxu0 %v427
        %535 = vmatprep.subr.mxu0 0.0
        %536 = vmatpush1.msra.mxu0 %v428
        %537 = vmatprep.subr.mxu0 0.0
        %538 = vmatpush1.msra.mxu0 %v429
        %539 = vmatprep.subr.mxu0 0.0
        %540 = vmatpush1.msra.mxu0 %v430
        %541 = vmatprep.subr.mxu0 0.0
        %542 = vmatpush1.msra.mxu0 %v431
        %543 = vmatprep.subr.mxu0 0.0
        %544 = vmatpush1.msra.mxu0 %v432
        %545 = vmatprep.subr.mxu0 0.0
        %546 = vmatpush1.msra.mxu0 %v433
        %547 = vmatprep.subr.mxu0 0.0
        %548 = vmatpush1.msra.mxu0 %v434
        %549 = vmatprep.subr.mxu0 0.0
        %550 = vmatpush1.msra.mxu0 %v435
        %551 = vmatprep.subr.mxu0 0.0
        %552 = vmatpush1.msra.mxu0 %v436
        %553 = vmatprep.subr.mxu0 0.0
        %554 = vmatpush1.msra.mxu0 %v437
        %555 = vmatprep.subr.mxu0 0.0
        %556 = vmatpush1.msra.mxu0 %v438
        %557 = vmatprep.subr.mxu0 0.0
        %558 = vmatpush1.msra.mxu0 %v439
        %559 = vmatprep.subr.mxu0 0.0
        %560 = vmatpush1.msra.mxu0 %v440
        %561 = vmatprep.subr.mxu0 0.0
        %562 = vmatpush1.msra.mxu0 %v441
        %563 = vmatprep.subr.mxu0 0.0
        %564 = vmatpush1.msra.mxu0 %v442
        %565 = vmatprep.subr.mxu0 0.0
        %566 = vmatpush1.msra.mxu0 %v443
        %567 = vmatprep.subr.mxu0 0.0
        %568 = vmatpush1.msra.mxu0 %v444
        %569 = vmatprep.subr.mxu0 0.0
        %570 = vmatpush1.msra.mxu0 %v445
        %571 = vmatprep.subr.mxu0 0.0
        %572 = vmatpush1.msra.mxu0 %v446
        %573 = vmatprep.subr.mxu0 0.0
        %574 = vmatpush1.msra.mxu0 %v447
        %575 = vmatprep.subr.mxu0 0.0
        %576 = vmatpush1.msra.mxu0 %v448
        %577 = vmatprep.subr.mxu0 0.0
        %578 = vmatpush1.msra.mxu0 %v449
        %579 = vmatprep.subr.mxu0 0.0
        %580 = vmatpush1.msra.mxu0 %v450
        %581 = vmatprep.subr.mxu0 0.0
        %582 = vmatpush1.msra.mxu0 %v451
        %583 = vmatprep.subr.mxu0 0.0
        %584 = vmatpush1.msra.mxu0 %v452
        %585 = vmatprep.subr.mxu0 0.0
        %586 = vmatpush1.msra.mxu0 %v453
        %587 = vmatprep.subr.mxu0 0.0
        %588 = vmatpush1.msra.mxu0 %v454
        %589 = vmatprep.mubr.f32.mxu0 %v390
        %590 = vmatmul.mubr.f32.gmra.mrb[0].mxu0 %v389
        %v591 = vpop.f32.mrb[0].mxu0
        %v592 = vadd.f32 %v522, %v591
        %v593 = vpop.f32.mrb[0].mxu0
        %594 = vdwg.mxu0
        %v595 = vadd.f32 %v386, %v592
        %596 = vst [vmem:[#allocation2] sm:$0xff] %v595
        %p597 = scmp.eq.s32.totalorder %s27, 1
        // Predicated region
        $region53: #{aligner_forward.1} parent=43 // pred_check
          %p598 = pneg %p597
        $region54: #{aligner_forward.1} parent=43 // pred_check_branch
          %600 = sbr.rel (%p598) target = $region56
        $region55: #{aligner_forward.1} parent=43 // pred_region
          %v601 = vld [vmem:[#allocation2] sm:$0xff]
          %v602 = vmul.f32 %v601, %v601
          %603 = vadd.xlane.f32.xlu0 %v602
          %v604 = vpop.xlane.xlu0 %603
          %v605 = vmax.f32 %v604, 1e-16
          %v606 = vrsqrt.pop %v605
          %v607 = vmul.f32 %v601, %v606
          %608 = vst [vmem:[%s369] sm:$0xff] %v607
          %v609 = vld [vmem:[%s365] sm:$0xff]
          %v610 = vld [vmem:[%s4] sm:$0xff]
          %v611 = vld [vmem:[%s4 + $0x8] sm:$0xff]
          %v612 = vld [vmem:[%s4 + $0x10] sm:$0xff]
          %v613 = vld [vmem:[%s4 + $0x18] sm:$0xff]
          %v614 = vld [vmem:[%s4 + $0x20] sm:$0xff]
          %v615 = vld [vmem:[%s4 + $0x28] sm:$0xff]
          %v616 = vld [vmem:[%s4 + $0x30] sm:$0xff]
          %v617 = vld [vmem:[%s4 + $0x38] sm:$0xff]
          %v618 = vld [vmem:[%s4 + $0x40] sm:$0xff]
          %v619 = vld [vmem:[%s4 + $0x48] sm:$0xff]
          %v620 = vld [vmem:[%s4 + $0x50] sm:$0xff]
          %v621 = vld [vmem:[%s4 + $0x58] sm:$0xff]
          %v622 = vld [vmem:[%s4 + $0x60] sm:$0xff]
          %v623 = vld [vmem:[%s4 + $0x68] sm:$0xff]
          %v624 = vld [vmem:[%s4 + $0x70] sm:$0xff]
          %v625 = vld [vmem:[%s4 + $0x78] sm:$0xff]
          %v626 = vld [vmem:[%s5] sm:$0x1]
          %v628 = vlaneseq
          %v629 = vshrl.u32 %v628, 7
          %v630 = vsub.s32 0, %v629
          %v631 = vrot.slane %v626, %v630
          %633 = vmatprep.subr.mxu0 0.0
          %634 = vmatpush1.msra.mxu0 %v610
          %635 = vmatprep.subr.mxu0 0.0
          %636 = vmatpush1.msra.mxu0 %v611
          %637 = vmatprep.subr.mxu0 0.0
          %638 = vmatpush1.msra.mxu0 %v612
          %639 = vmatprep.subr.mxu0 0.0
          %640 = vmatpush1.msra.mxu0 %v613
          %641 = vmatprep.subr.mxu0 0.0
          %642 = vmatpush1.msra.mxu0 %v614
          %643 = vmatprep.subr.mxu0 0.0
          %644 = vmatpush1.msra.mxu0 %v615
          %645 = vmatprep.subr.mxu0 0.0
          %646 = vmatpush1.msra.mxu0 %v616
          %647 = vmatprep.subr.mxu0 0.0
          %648 = vmatpush1.msra.mxu0 %v617
          %649 = vmatprep.subr.mxu0 0.0
          %650 = vmatpush1.msra.mxu0 %v618
          %651 = vmatprep.subr.mxu0 0.0
          %652 = vmatpush1.msra.mxu0 %v619
          %653 = vmatprep.subr.mxu0 0.0
          %654 = vmatpush1.msra.mxu0 %v620
          %655 = vmatprep.subr.mxu0 0.0
          %656 = vmatpush1.msra.mxu0 %v621
          %657 = vmatprep.subr.mxu0 0.0
          %658 = vmatpush1.msra.mxu0 %v622
          %659 = vmatprep.subr.mxu0 0.0
          %660 = vmatpush1.msra.mxu0 %v623
          %661 = vmatprep.subr.mxu0 0.0
          %662 = vmatpush1.msra.mxu0 %v624
          %663 = vmatprep.subr.mxu0 0.0
          %664 = vmatpush1.msra.mxu0 %v625
          %665 = vmatprep.subr.mxu0 0.0
          %666 = vmatpush1.msra.mxu0 0.0
          %667 = vmatprep.subr.mxu0 0.0
          %668 = vmatpush1.msra.mxu0 0.0
          %669 = vmatprep.subr.mxu0 0.0
          %670 = vmatpush1.msra.mxu0 0.0
          %671 = vmatprep.subr.mxu0 0.0
          %672 = vmatpush1.msra.mxu0 0.0
          %673 = vmatprep.subr.mxu0 0.0
          %674 = vmatpush1.msra.mxu0 0.0
          %675 = vmatprep.subr.mxu0 0.0
          %676 = vmatpush1.msra.mxu0 0.0
          %677 = vmatprep.subr.mxu0 0.0
          %678 = vmatpush1.msra.mxu0 0.0
          %679 = vmatprep.subr.mxu0 0.0
          %680 = vmatpush1.msra.mxu0 0.0
          %681 = vmatprep.subr.mxu0 0.0
          %682 = vmatpush1.msra.mxu0 0.0
          %683 = vmatprep.subr.mxu0 0.0
          %684 = vmatpush1.msra.mxu0 0.0
          %685 = vmatprep.subr.mxu0 0.0
          %686 = vmatpush1.msra.mxu0 0.0
          %687 = vmatprep.subr.mxu0 0.0
          %688 = vmatpush1.msra.mxu0 0.0
          %689 = vmatprep.subr.mxu0 0.0
          %690 = vmatpush1.msra.mxu0 0.0
          %691 = vmatprep.subr.mxu0 0.0
          %692 = vmatpush1.msra.mxu0 0.0
          %693 = vmatprep.subr.mxu0 0.0
          %694 = vmatpush1.msra.mxu0 0.0
          %695 = vmatprep.subr.mxu0 0.0
          %696 = vmatpush1.msra.mxu0 0.0
          %697 = vmatprep.mubr.f32.mxu0 0.0
          %698 = vmatmul.mubr.f32.gmra.mrb[0].mxu0 %v609
          %v699 = vpop.f32.mrb[0].mxu0
          %v700 = vadd.f32 %v631, %v699
          %v701 = vpop.f32.mrb[0].mxu0
          %702 = vdwg.mxu0
          %v703 = vmul.f32 %v700, %v700
          %704 = vadd.xlane.f32.xlu0 %v703
          %v705 = vpop.xlane.xlu0 %704
          %v706 = vmax.f32 %v705, 1e-16
          %v707 = vrsqrt.pop %v706
          %v708 = vmul.f32 %v700, %v707
          %709 = vst [vmem:[%s373] sm:$0xff] %v708
        $region56: #{aligner_forward.1} parent=43 // pred_fallthru
          _
        %p710 = scmp.lt.s32.totalorder %s26, 0
        %s711 = scalar_select %p710, %s26, 0
        %s712 = smul.addr %s711, 8
        %s713 = scalar_lea.vmem %s6, %s712
        %p714 = scmp.lt.s32.totalorder %s26, 0
        %s715 = scalar_select %p714, %s26, 0
        %s716 = smul.addr %s715, 8
        %s717 = scalar_lea.vmem %s7, %s716
        // Predicated region
        $region57: #{aligner_forward.1} parent=43 // pred_check
          %p718 = pneg %p195
        $region58: #{aligner_forward.1} parent=43 // pred_check_branch
          %720 = sbr.rel (%p718) target = $region60
        $region59: #{aligner_forward.1} parent=43 // pred_region
          _
        $region60: #{aligner_forward.1} parent=43 // pred_fallthru
          _
        // Predicated region
        $region61: #{aligner_forward.1} parent=43 // pred_check
          %p721 = pneg %p221
        $region62: #{aligner_forward.1} parent=43 // pred_check_branch
          %723 = sbr.rel (%p721) target = $region64
        $region63: #{aligner_forward.1} parent=43 // pred_region
          _
        $region64: #{aligner_forward.1} parent=43 // pred_fallthru
          _
        // Predicated region
        $region65: #{aligner_forward.1} parent=43 // pred_check
          %p724 = pneg %p195
        $region66: #{aligner_forward.1} parent=43 // pred_check_branch
          %726 = sbr.rel (%p724) target = $region68
        $region67: #{aligner_forward.1} parent=43 // pred_region
          %p727 = scmp.lt.s32.totalorder %s26, 0
          %s728 = scalar_select %p727, %s26, 0
          %s729 = smul.addr %s728, 8
          %s730 = scalar_lea.vmem %s6, %s729
        $region68: #{aligner_forward.1} parent=43 // pred_fallthru
          _
        // Predicated region
        $region69: #{aligner_forward.1} parent=43 // pred_check
          %p731 = pneg %p221
        $region70: #{aligner_forward.1} parent=43 // pred_check_branch
          %733 = sbr.rel (%p731) target = $region72
        $region71: #{aligner_forward.1} parent=43 // pred_region
          %p734 = scmp.lt.s32.totalorder %s26, 0
          %s735 = scalar_select %p734, %s26, 0
          %s736 = smul.addr %s735, 8
          %s737 = scalar_lea.vmem %s7, %s736
        $region72: #{aligner_forward.1} parent=43 // pred_fallthru
          _
      $region44: #{aligner_forward.1} parent=5 // pred_fallthru
        _
      %p738 = scmp.le.s32.totalorder 2, %s17
      // Predicated region
      $region73: #{aligner_forward.1} parent=5 // pred_check
        %p739 = pneg %p738
      $region74: #{aligner_forward.1} parent=5 // pred_check_branch
        %741 = sbr.rel (%p739) target = $region76
      $region75: #{aligner_forward.1} parent=5 // pred_region
        %s742 = ssub.s32 %s17, 2
      $region76: #{aligner_forward.1} parent=5 // pred_fallthru
        _
    $region6: #{aligner_forward.1} parent=1 // loop_footer
      %s21 = sadd.s32 1, %s17
    $region7: #{aligner_forward.1} parent=1 // loop_footer_branch
      %16 = sbr.rel target = $region3
    $region8: #{aligner_forward.1} parent=1 // loop_exit
      _
    %743 = vsyncpa [#allocation4], 1
    %s744 = scalar_lea.sflag [#allocation4], 1
    %745 = vsyncpa %s744, 1

</llo_original>
